<compile_context>
chip_gen: v7x
topology: tpu7x:2x2x1
jax: 0.10.0
libtpu: 0.0.40
codegen_flags: <defaults>
</compile_context>

<pallas_src>
import functools

import jax
import jax.numpy as jnp
from jax.experimental import pallas as pl
from jax.experimental.pallas import tpu as pltpu

COSINE_EPS = 1e-8          # torch.nn.CosineSimilarity default eps
LANE = 128                 # TPU lane width
VMEM_BUFFER_BUDGET = 12 * 1024 * 1024   # for 2 inputs x 2 pipeline buffers


def _round_up(x, m):
    return (x + m - 1) // m * m


def _num_tensorcores():
    """Best-effort TensorCore count (2 on v7x, 1 on v5e/v6e)."""
    try:
        info = pltpu.get_tpu_info()
        for name in ("num_cores", "core_count", "num_tensorcores",
                     "tensorcores_per_chip", "num_tensor_cores"):
            n = getattr(info, name, None)
            if n is not None:
                n = int(n)
                if 1 <= n <= 16:
                    return n
    except Exception:
        pass
    try:
        kind = jax.devices()[0].device_kind.lower()
        if "v7" in kind:
            return 2
    except Exception:
        pass
    return 1


def _cosine_rot_loss_kernel(r1_ref, r2_ref, o_ref, acc_ref, *,
                            batch, tb, nb_inner, chunk):
    """Accumulates sum(1 - cos(R1, R2)) for this core's batch slice.

    r1_ref / r2_ref : (9, tb) lane-dense blocks, flat row index = col*3 + row.
    o_ref           : (1, 1) SMEM per-core partial sum (written once).
    acc_ref         : (3, chunk) f32 VMEM lane-parallel accumulator.
    """
    c = pl.program_id(0)   # partial / core index  ("parallel")
    i = pl.program_id(1)   # batch-tile index      ("arbitrary")

    @pl.when(i == 0)
    def _init():
        acc_ref[...] = jnp.zeros_like(acc_ref)

    eps2 = jnp.float32(COSINE_EPS * COSINE_EPS)
    base_col = (c * nb_inner + i) * tb

    def body(j, carry):
        off = pl.multiple_of(j * chunk, LANE)
        r1 = r1_ref[:, pl.ds(off, chunk)].astype(jnp.float32)   # (9, chunk)
        r2 = r2_ref[:, pl.ds(off, chunk)].astype(jnp.float32)

        p = r1 * r2
        q1 = r1 * r1
        q2 = r2 * r2
        # Reduce over the 3 matrix columns (dim=2 of the original (B,3,3));
        # flat row index = col*3 + row, so each column is a sublane triple.
        dot = p[0:3] + p[3:6] + p[6:9]                           # (3, chunk)
        s1 = q1[0:3] + q1[3:6] + q1[6:9]
        s2 = q2[0:3] + q2[3:6] + q2[6:9]

        # torch: cos = x.y / (max(|x|,eps) * max(|y|,eps))
        #            = x.y * rsqrt(max(|x|^2,eps^2) * max(|y|^2,eps^2))
        cos = dot * jax.lax.rsqrt(jnp.maximum(s1, eps2) * jnp.maximum(s2, eps2))

        # Mask out lanes past the true batch (ragged / hung-over last block).
        col = (base_col + off
               + jax.lax.broadcasted_iota(jnp.int32, (3, chunk), 1))
        acc_ref[...] += jnp.where(col < batch, 1.0 - cos, 0.0)
        return carry

    jax.lax.fori_loop(0, tb // chunk, body, 0)

    @pl.when(i == nb_inner - 1)
    def _finalize():
        o_ref[0, 0] = jnp.sum(acc_ref[...])


def _cosine_loss_from_9xB(r1, r2, batch, *, block_b=32768):
    """Loss for inputs already in lane-dense (9, Bp) layout (Bp >= 128)."""
    Bp = r1.shape[1]
    itemsize = jnp.dtype(r1.dtype).itemsize

    nc = _num_tensorcores()
    num_partials = nc if (nc > 1 and batch >= nc * 2048) else 1

    # VMEM cap: per input pipeline buffer ~= 16 (padded sublanes) * tb * itemsize,
    # 2 inputs x 2 buffers must stay within the budget (safe on v5e's default).
    tb_cap = (VMEM_BUFFER_BUDGET // (4 * 16 * itemsize)) // LANE * LANE
    tb = min(_round_up(block_b, LANE),
             max(tb_cap, LANE),
             _round_up(pl.cdiv(Bp, num_partials), LANE),
             (Bp // LANE) * LANE)
    tb = max(tb, LANE)

    # Inner compute chunk (lane sub-window); biggest nice divisor of tb.
    chunk = LANE
    for cand in (1024, 512, 256):
        if tb % cand == 0:
            chunk = cand
            break

    nb_inner = pl.cdiv(pl.cdiv(Bp, num_partials), tb)

    kernel = functools.partial(
        _cosine_rot_loss_kernel,
        batch=batch, tb=tb, nb_inner=nb_inner, chunk=chunk)

    in_spec = pl.BlockSpec((9, tb), lambda c, i: (0, c * nb_inner + i))
    partials = pl.pallas_call(
        kernel,
        out_shape=jax.ShapeDtypeStruct((num_partials, 1), jnp.float32),
        grid_spec=pltpu.PrefetchScalarGridSpec(
            num_scalar_prefetch=0,
            grid=(num_partials, nb_inner),
            in_specs=[in_spec, in_spec],
            out_specs=pl.BlockSpec((1, 1), lambda c, i: (c, 0),
                                   memory_space=pltpu.MemorySpace.SMEM),
            scratch_shapes=[pltpu.VMEM((3, chunk), jnp.float32)],
        ),
        compiler_params=pltpu.CompilerParams(
            dimension_semantics=("parallel", "arbitrary"),
            vmem_limit_bytes=32 * 1024 * 1024),
    )(r1, r2)

    return jnp.sum(partials) / (3.0 * batch)


def rotation_cosine_loss_colmajor(r1_9xB, r2_9xB, *, block_b=32768):
    """Same loss for rotations already stored as (9, B), flat row = col*3+row.

    Prefer this entry point when the producer can emit the column-major layout
    directly: it avoids the extra HBM relayout pass of `rotation_cosine_loss`.
    """
    assert r1_9xB.shape == r2_9xB.shape and r1_9xB.shape[0] == 9
    B = r1_9xB.shape[1]
    r1, r2 = r1_9xB, r2_9xB
    if B < LANE:  # tiny pad so a block never exceeds the array extent
        r1 = jnp.pad(r1, ((0, 0), (0, LANE - B)))
        r2 = jnp.pad(r2, ((0, 0), (0, LANE - B)))
    return _cosine_loss_from_9xB(r1, r2, B, block_b=block_b)


def rotation_cosine_loss(R1, R2, *, block_b=32768):
    """mean(1 - cosine_similarity(R1, R2, dim=2)) for R1, R2 of shape (B,3,3)."""
    assert R1.shape == R2.shape and R1.shape[-2:] == (3, 3)
    B = R1.shape[0]
    # Lane-dense relayout (B,3,3) -> (9,B), flat row index = col*3 + row.
    # NOTE: this transpose is one extra HBM read+write pass per input; if the
    # rotations can be produced in (9,B) / (3,3,B) layout upstream, use
    # rotation_cosine_loss_colmajor instead and skip it.
    r1 = jnp.transpose(R1, (2, 1, 0)).reshape(9, B)
    r2 = jnp.transpose(R2, (2, 1, 0)).reshape(9, B)
    if B < LANE:
        r1 = jnp.pad(r1, ((0, 0), (0, LANE - B)))
        r2 = jnp.pad(r2, ((0, 0), (0, LANE - B)))
    return _cosine_loss_from_9xB(r1, r2, B, block_b=block_b)


def _reference_cosine_loss(R1, R2):
    """Pure-JAX reference mirroring torch.nn.CosineSimilarity(dim=2)."""
    r1 = R1.astype(jnp.float32)
    r2 = R2.astype(jnp.float32)
    dot = jnp.sum(r1 * r2, axis=-1)
    n1 = jnp.sqrt(jnp.sum(r1 * r1, axis=-1))
    n2 = jnp.sqrt(jnp.sum(r2 * r2, axis=-1))
    cos = dot / (jnp.maximum(n1, COSINE_EPS) * jnp.maximum(n2, COSINE_EPS))
    return jnp.mean(1.0 - cos)


if __name__ == "__main__":
    key = jax.random.PRNGKey(0)
    k1, k2, k3, k4, k5, k6 = jax.random.split(key, 6)

    # Small batch (< one lane tile): exercises the tiny-pad path + mask.
    B = 8
    R1 = jax.random.normal(k1, (B, 3, 3), dtype=jnp.float32)
    R2 = jax.random.normal(k2, (B, 3, 3), dtype=jnp.float32)
    loss = jax.block_until_ready(rotation_cosine_loss(R1, R2))
    ref = jax.block_until_ready(_reference_cosine_loss(R1, R2))
    assert jnp.allclose(loss, ref, atol=1e-5, rtol=1e-5), (loss, ref)

    # Non-multiple batch with several grid steps (ragged last block, no pad,
    # accumulator flush on the final inner step).
    B2 = 300
    R1b = jax.random.normal(k3, (B2, 3, 3), dtype=jnp.float32)
    R2b = jax.random.normal(k4, (B2, 3, 3), dtype=jnp.float32)
    loss2 = jax.block_until_ready(rotation_cosine_loss(R1b, R2b, block_b=128))
    ref2 = jax.block_until_ready(_reference_cosine_loss(R1b, R2b))
    assert jnp.allclose(loss2, ref2, atol=1e-5, rtol=1e-5), (loss2, ref2)

    # bf16 inputs with the default (large-tile) configuration.
    B3 = 1000
    R1c = jax.random.normal(k5, (B3, 3, 3), dtype=jnp.bfloat16)
    R2c = jax.random.normal(k6, (B3, 3, 3), dtype=jnp.bfloat16)
    loss3 = jax.block_until_ready(rotation_cosine_loss(R1c, R2c))
    ref3 = jax.block_until_ready(_reference_cosine_loss(R1c, R2c))
    assert jnp.allclose(loss3, ref3, atol=1e-4, rtol=1e-4), (loss3, ref3)

    print("KERNEL_OK")
</pallas_src>

<mosaic_0001>
module attributes {stable_mosaic.version = 11 : i64} {
  func.func @_cosine_rot_loss_kernel(%arg0: i32, %arg1: i32, %arg2: memref<9x128xf32, #tpu.memory_space<vmem>>, %arg3: memref<9x128xf32, #tpu.memory_space<vmem>>, %arg4: memref<1x1xf32, #tpu.memory_space<smem>>, %arg5: memref<3x128xf32, #tpu.memory_space<vmem>>) attributes {dimension_semantics = [#tpu.dimension_semantics<parallel>, #tpu.dimension_semantics<arbitrary>], iteration_bounds = array<i64: 1, 1>, scalar_prefetch = 0 : i64, scratch_operands = 1 : i64, tpu.core_type = #tpu.core_type<tc>, window_params = [{transform_indices = @transform_0, window_bounds = array<i64: 9, 128>}, {transform_indices = @transform_1, window_bounds = array<i64: 9, 128>}, {transform_indices = @transform_2, window_bounds = array<i64: 1, 1>}]} {
    %c0_i32 = arith.constant 0 : i32
    %0 = arith.cmpi eq, %arg1, %c0_i32 : i32
    %1 = arith.extui %0 : i1 to i32
    %c0_i32_0 = arith.constant 0 : i32
    %2 = arith.cmpi ne, %1, %c0_i32_0 : i32
    scf.if %2 {
      %cst_13 = arith.constant 0.000000e+00 : f32
      %53 = vector.broadcast %cst_13 : f32 to vector<3x128xf32>
      %c0_14 = arith.constant 0 : index
      %c0_15 = arith.constant 0 : index
      %54 = vector.load %arg5[%c0_14, %c0_15] : memref<3x128xf32, #tpu.memory_space<vmem>>, vector<3x128xf32>
      tpu.vector_store %arg5[%c0_14, %c0_15], %53 {strides = array<i32>} : memref<3x128xf32, #tpu.memory_space<vmem>>, vector<3x128xf32>,
    } else {
    }
    %c1_i32 = arith.constant 1 : i32
    %3 = arith.muli %arg0, %c1_i32 : i32
    %4 = arith.addi %3, %arg1 : i32
    %c128_i32 = arith.constant 128 : i32
    %5 = arith.muli %4, %c128_i32 : i32
    %cst = arith.constant 1.000000e-16 : f32
    %c0_i32_1 = arith.constant 0 : i32
    %c128_i32_2 = arith.constant 128 : i32
    %6 = arith.muli %c0_i32_1, %c128_i32_2 : i32
    %7 = tpu.assume_multiple %6, 128 : i32
    %c0 = arith.constant 0 : index
    %8 = arith.index_cast %7 : i32 to index
    %9 = vector.load %arg2[%c0, %8] : memref<9x128xf32, #tpu.memory_space<vmem>>, vector<9x128xf32>
    %c0_3 = arith.constant 0 : index
    %10 = arith.index_cast %7 : i32 to index
    %11 = vector.load %arg3[%c0_3, %10] : memref<9x128xf32, #tpu.memory_space<vmem>>, vector<9x128xf32>
    %12 = arith.mulf %9, %11 : vector<9x128xf32>
    %13 = arith.mulf %9, %9 : vector<9x128xf32>
    %14 = arith.mulf %11, %11 : vector<9x128xf32>
    %15 = vector.extract_strided_slice %12 {offsets = [0, 0], sizes = [3, 128], strides = [1, 1]} : vector<9x128xf32> to vector<3x128xf32>
    %16 = vector.extract_strided_slice %12 {offsets = [3, 0], sizes = [3, 128], strides = [1, 1]} : vector<9x128xf32> to vector<3x128xf32>
    %17 = arith.addf %15, %16 : vector<3x128xf32>
    %18 = vector.extract_strided_slice %12 {offsets = [6, 0], sizes = [3, 128], strides = [1, 1]} : vector<9x128xf32> to vector<3x128xf32>
    %19 = arith.addf %17, %18 : vector<3x128xf32>
    %20 = vector.extract_strided_slice %13 {offsets = [0, 0], sizes = [3, 128], strides = [1, 1]} : vector<9x128xf32> to vector<3x128xf32>
    %21 = vector.extract_strided_slice %13 {offsets = [3, 0], sizes = [3, 128], strides = [1, 1]} : vector<9x128xf32> to vector<3x128xf32>
    %22 = arith.addf %20, %21 : vector<3x128xf32>
    %23 = vector.extract_strided_slice %13 {offsets = [6, 0], sizes = [3, 128], strides = [1, 1]} : vector<9x128xf32> to vector<3x128xf32>
    %24 = arith.addf %22, %23 : vector<3x128xf32>
    %25 = vector.extract_strided_slice %14 {offsets = [0, 0], sizes = [3, 128], strides = [1, 1]} : vector<9x128xf32> to vector<3x128xf32>
    %26 = vector.extract_strided_slice %14 {offsets = [3, 0], sizes = [3, 128], strides = [1, 1]} : vector<9x128xf32> to vector<3x128xf32>
    %27 = arith.addf %25, %26 : vector<3x128xf32>
    %28 = vector.extract_strided_slice %14 {offsets = [6, 0], sizes = [3, 128], strides = [1, 1]} : vector<9x128xf32> to vector<3x128xf32>
    %29 = arith.addf %27, %28 : vector<3x128xf32>
    %30 = vector.broadcast %cst : f32 to vector<3x128xf32>
    %31 = arith.maximumf %24, %30 : vector<3x128xf32>
    %32 = vector.broadcast %cst : f32 to vector<3x128xf32>
    %33 = arith.maximumf %29, %32 : vector<3x128xf32>
    %34 = arith.mulf %31, %33 : vector<3x128xf32>
    %35 = math.rsqrt %34 : vector<3x128xf32>
    %36 = arith.mulf %19, %35 : vector<3x128xf32>
    %37 = arith.addi %5, %7 : i32
    %38 = tpu.iota {dimensions = array<i32: 1>} : vector<3x128xi32>
    %39 = vector.broadcast %37 : i32 to vector<3x128xi32>
    %40 = arith.addi %39, %38 : vector<3x128xi32>
    %c0_4 = arith.constant 0 : index
    %c0_5 = arith.constant 0 : index
    %41 = vector.load %arg5[%c0_4, %c0_5] : memref<3x128xf32, #tpu.memory_space<vmem>>, vector<3x128xf32>
    %c8_i32 = arith.constant 8 : i32
    %42 = vector.broadcast %c8_i32 : i32 to vector<3x128xi32>
    %43 = arith.cmpi slt, %40, %42 : vector<3x128xi32>
    %cst_6 = arith.constant 1.000000e+00 : f32
    %44 = vector.broadcast %cst_6 : f32 to vector<3x128xf32>
    %45 = arith.subf %44, %36 : vector<3x128xf32>
    %cst_7 = arith.constant 0.000000e+00 : f32
    %46 = vector.broadcast %cst_7 : f32 to vector<3x128xf32>
    %47 = arith.select %43, %45, %46 : vector<3x128xi1>, vector<3x128xf32>
    %48 = arith.addf %41, %47 : vector<3x128xf32>
    %c0_8 = arith.constant 0 : index
    %c0_9 = arith.constant 0 : index
    %49 = vector.load %arg5[%c0_8, %c0_9] : memref<3x128xf32, #tpu.memory_space<vmem>>, vector<3x128xf32>
    tpu.vector_store %arg5[%c0_8, %c0_9], %48 {strides = array<i32>} : memref<3x128xf32, #tpu.memory_space<vmem>>, vector<3x128xf32>,
    %c1_i32_10 = arith.constant 1 : i32
    %c0_i32_11 = arith.constant 0 : i32
    %50 = arith.cmpi eq, %arg1, %c0_i32_11 : i32
    %51 = arith.extui %50 : i1 to i32
    %c0_i32_12 = arith.constant 0 : i32
    %52 = arith.cmpi ne, %51, %c0_i32_12 : i32
    scf.if %52 {
      %c0_13 = arith.constant 0 : index
      %c0_14 = arith.constant 0 : index
      %53 = vector.load %arg5[%c0_13, %c0_14] : memref<3x128xf32, #tpu.memory_space<vmem>>, vector<3x128xf32>
      %54 = vector.shape_cast %53 : vector<3x128xf32> to vector<1x3x128xf32>
      %cst_15 = arith.constant dense<0.000000e+00> : vector<1xf32>
      %55 = vector.multi_reduction <add>, %54, %cst_15 [1, 2] : vector<1x3x128xf32> to vector<1xf32>
      %56 = vector.shape_cast %55 : vector<1xf32> to vector<1x1x1xf32>
      %57 = vector.extract %56[0, 0, 0] : f32 from vector<1x1x1xf32>
      %c0_16 = arith.constant 0 : index
      %c0_17 = arith.constant 0 : index
      %58 = memref.load %arg4[%c0_16, %c0_17] : memref<1x1xf32, #tpu.memory_space<smem>>
      memref.store %57, %arg4[%c0_16, %c0_17] : memref<1x1xf32, #tpu.memory_space<smem>>
    } else {
    }
    return
  }
  func.func @transform_0(%arg0: i32, %arg1: i32) -> (i32, i32) {
    %c1_i32 = arith.constant 1 : i32
    %0 = arith.muli %arg0, %c1_i32 : i32
    %1 = arith.addi %0, %arg1 : i32
    %c0_i32 = arith.constant 0 : i32
    %c0_i32_0 = arith.constant 0 : i32
    return %c0_i32, %1 : i32, i32
  }
  func.func @transform_1(%arg0: i32, %arg1: i32) -> (i32, i32) {
    %c1_i32 = arith.constant 1 : i32
    %0 = arith.muli %arg0, %c1_i32 : i32
    %1 = arith.addi %0, %arg1 : i32
    %c0_i32 = arith.constant 0 : i32
    %c0_i32_0 = arith.constant 0 : i32
    return %c0_i32, %1 : i32, i32
  }
  func.func @transform_2(%arg0: i32, %arg1: i32) -> (i32, i32) {
    %c0_i32 = arith.constant 0 : i32
    %c0_i32_0 = arith.constant 0 : i32
    return %arg0, %c0_i32 : i32, i32
  }
}

</mosaic_0001>

<llo_original>
// kernel: tpu_custom_call.1
$region0: #{tpu_custom_call.1}
  #allocation0 [shape = 'u32[]', space=smem, size = 0x4, offset = 0x4, fixed_abs, tag = 'smem constant byte address 0x4 - core index']
  #allocation1 [shape = 'u32[144,128]{1,0:T(1,128)}', space=vmem, size = 0x12000, scoped, tag = 'internal scratch']
  #allocation2 [shape = 'f32[3,128]{1,0:T(4,128)}', space=vmem, size = 0x800, scoped, tag = 'scratch operand']
  %s0 = inlined_call_operand.hbm [shape: f32[9,128], index: 0, kind: input, shape index: {}]
  %s1 = inlined_call_operand.hbm [shape: f32[9,128], index: 1, kind: input, shape index: {}]
  %s2 = inlined_call_operand.hbm [shape: f32[1,1], index: 2, kind: output, shape index: {}]
  %s3 = sld [smem:[#allocation0]]
  $region34: #{tpu_custom_call.1} parent=0
    _
  %s5 = ssub.s32 1, %s3
  %s6 = scalar_select 0, %s5, %s3
  $region1: #{tpu_custom_call.1} parent=0
    #allocation3 [shape = 'u8[8192]{0}', space=vmem, size = 0x2000, scoped, tag = 'input window, operand 0, single buffered']
    #allocation4 [shape = 's32[1]{0}', space=sflag, size = 0x4, scoped, tag = 'scoped memory for tpu_custom_call.1']
    #allocation5 [shape = 's32[1]{0}', space=sflag, size = 0x4, scoped, tag = 'scoped memory for tpu_custom_call.1']
    #allocation6 [shape = 'u8[8192]{0}', space=vmem, size = 0x2000, scoped, tag = 'input window, operand 1, single buffered']
    #allocation7 [shape = 's32[1]{0}', space=sflag, size = 0x4, scoped, tag = 'scoped memory for tpu_custom_call.1']
    #allocation8 [shape = 'u8[512]{0}', space=smem, size = 0x200, scoped, tag = 'output window, operand 0, single buffered']
    %7 = vsyncpa [#allocation4], 0
    %8 = vsyncpa [#allocation7], 0
    %9 = vsyncpa [#allocation5], 0
    // Predicated region
    $region2: #{tpu_custom_call.1} parent=1 // pred_check
      _
    $region3: #{tpu_custom_call.1} parent=1 // pred_check_branch
      %11 = sbr.rel (0) target = $region5
    $region4: #{tpu_custom_call.1} parent=1 // pred_region
      %s12 = sadd.s32 0, 0
      %s14 = ssub.s32 256, 256
      %15 = vsyncadd [#allocation4], %s14
      %s16 = smul.addr %s12, 128
      %s17 = scalar_lea.hbm %s0, %s16
      %s18 = sshll.u32 [#allocation3], 4
      %s19 = int_to_ptr.vmem [resolvable:$true] %s18
      %24 = dma.hbm_to_vmem [thread:$0]  %s17, 256, %s19, [#allocation4], 128, 128, 8
    $region5: #{tpu_custom_call.1} parent=1 // pred_fallthru
      _
    // Predicated region
    $region6: #{tpu_custom_call.1} parent=1 // pred_check
      _
    $region7: #{tpu_custom_call.1} parent=1 // pred_check_branch
      %26 = sbr.rel (0) target = $region9
    $region8: #{tpu_custom_call.1} parent=1 // pred_region
      %s27 = sadd.s32 0, 0
      %s29 = ssub.s32 256, 256
      %30 = vsyncadd [#allocation7], %s29
      %s31 = smul.addr %s27, 128
      %s32 = scalar_lea.hbm %s1, %s31
      %s33 = sshll.u32 [#allocation6], 4
      %s34 = int_to_ptr.vmem [resolvable:$true] %s33
      %39 = dma.hbm_to_vmem [thread:$0]  %s32, 256, %s34, [#allocation7], 128, 128, 8
    $region9: #{tpu_custom_call.1} parent=1 // pred_fallthru
      _
    // Predicated region
    $region10: #{tpu_custom_call.1} parent=1 // pred_check
      _
    $region11: #{tpu_custom_call.1} parent=1 // pred_check_branch
      %41 = sbr.rel (0) target = $region13
    $region12: #{tpu_custom_call.1} parent=1 // pred_region
      %42 = dma.done [#allocation4], 256
    $region13: #{tpu_custom_call.1} parent=1 // pred_fallthru
      _
    // Predicated region
    $region14: #{tpu_custom_call.1} parent=1 // pred_check
      _
    $region15: #{tpu_custom_call.1} parent=1 // pred_check_branch
      %44 = sbr.rel (0) target = $region17
    $region16: #{tpu_custom_call.1} parent=1 // pred_region
      %45 = dma.done [#allocation7], 256
    $region17: #{tpu_custom_call.1} parent=1 // pred_fallthru
      _
    %s46 = sadd.s32 0, 0
    %s47 = sadd.s32 0, 0
    %p48 = scmp.eq.s32.totalorder 0, 0
    // Predicated region
    $region18: #{tpu_custom_call.1} parent=1 // pred_check
      %p49 = pneg %p48
    $region19: #{tpu_custom_call.1} parent=1 // pred_check_branch
      %51 = sbr.rel (%p49) target = $region21
    $region20: #{tpu_custom_call.1} parent=1 // pred_region
      %52 = vst [vmem:[#allocation2] sm:$0x7] 0.0
    $region21: #{tpu_custom_call.1} parent=1 // pred_fallthru
      _
    %s53 = sadd.s32 0, 0
    %s54 = smul.u32 %s53, 128
    %v55 = vld [vmem:[#allocation3] sm:$0xff]
    %v56 = vld [vmem:[#allocation3 + $0x8] sm:$0x1]
    %v57 = vld [vmem:[#allocation6] sm:$0xff]
    %v58 = vld [vmem:[#allocation6 + $0x8] sm:$0x1]
    %v59 = vmul.f32 %v55, %v57
    %v60 = vmul.f32 %v56, %v58
    %v61 = vmul.f32 %v55, %v55
    %v62 = vmul.f32 %v56, %v56
    %v63 = vmul.f32 %v57, %v57
    %v64 = vmul.f32 %v58, %v58
    %v66 = vrot.slane %v59, 3
    %v68 = vadd.f32 %v59, %v66
    %vm70 = vcmask 1041408
    %v71 = vrot.slane %v59, 6
    %v72 = vrot.slane %v60, 6
    %v73 = vsel %vm70, %v71, %v72
    %v75 = vadd.f32 %v68, %v73
    %v77 = vrot.slane %v61, 3
    %v79 = vadd.f32 %v61, %v77
    %v81 = vrot.slane %v61, 6
    %v82 = vrot.slane %v62, 6
    %v83 = vsel %vm70, %v81, %v82
    %v85 = vadd.f32 %v79, %v83
    %v87 = vrot.slane %v63, 3
    %v89 = vadd.f32 %v63, %v87
    %v91 = vrot.slane %v63, 6
    %v92 = vrot.slane %v64, 6
    %v93 = vsel %vm70, %v91, %v92
    %v95 = vadd.f32 %v89, %v93
    %v96 = vmax.f32 %v85, 1e-16
    %v97 = vmax.f32 %v95, 1e-16
    %v98 = vmul.f32 %v96, %v97
    %v99 = vrsqrt.pop %v98
    %v100 = vmul.f32 %v75, %v99
    %s101 = sadd.s32 %s54, 0
    %v102 = vlaneseq
    %v103 = vand.u32 %v102, 127
    %v104 = vstv %s101
    %v105 = vadd.s32 %v104, %v103
    %v106 = vld [vmem:[#allocation2] sm:$0x7]
    %vm107 = vcmp.lt.s32.totalorder %v105, 8
    %v108 = vsub.f32 1.0, %v100
    %v109 = vsel %vm107, %v108, 0.0
    %v110 = vadd.f32 %v106, %v109
    %111 = vst [vmem:[#allocation2] sm:$0x7] %v110
    // Predicated region
    $region22: #{tpu_custom_call.1} parent=1 // pred_check
      %p112 = pneg %p48
    $region23: #{tpu_custom_call.1} parent=1 // pred_check_branch
      %114 = sbr.rel (%p112) target = $region25
    $region24: #{tpu_custom_call.1} parent=1 // pred_region
      %v115 = vld [vmem:[#allocation2] sm:$0x7]
      %vm116 = vcmask 1042432
      %v117 = vsel %vm116, %v115, 0.0
      %118 = vadd.xlane.f32.xlu0 %v117
      %v119 = vpop.xlane.xlu0 %118
      %v120 = vrot.slane %v119, 4
      %v121 = vadd.f32 %v119, %v120
      %v122 = vrot.slane %v121, 2
      %v123 = vadd.f32 %v121, %v122
      %v124 = vrot.slane %v123, 1
      %v125 = vadd.f32 %v123, %v124
      %s126 = vtos %v125
      %s127 = scalar_lea.smem [#allocation8], 0
      %128 = sst [smem:[%s127]] %s126
    $region25: #{tpu_custom_call.1} parent=1 // pred_fallthru
      _
    // Predicated region
    $region26: #{tpu_custom_call.1} parent=1 // pred_check
      _
    $region27: #{tpu_custom_call.1} parent=1 // pred_check_branch
      %130 = sbr.rel (0) target = $region29
    $region28: #{tpu_custom_call.1} parent=1 // pred_region
      %s132 = ssub.s32 16, 16
      %133 = vsyncadd [#allocation5], %s132
      %136 = dma.smem_to_hbm [#allocation8], 16, %s2, [#allocation5]
    $region29: #{tpu_custom_call.1} parent=1 // pred_fallthru
      _
    // Predicated region
    $region30: #{tpu_custom_call.1} parent=1 // pred_check
      _
    $region31: #{tpu_custom_call.1} parent=1 // pred_check_branch
      %138 = sbr.rel (0) target = $region33
    $region32: #{tpu_custom_call.1} parent=1 // pred_region
      %139 = dma.done [#allocation5], 16
    $region33: #{tpu_custom_call.1} parent=1 // pred_fallthru
      _
    %140 = sfence
    %141 = vsyncpa [#allocation4], 1
    %142 = vsyncpa [#allocation7], 1
    %143 = vsyncpa [#allocation5], 1

</llo_original>
